<compile_context>
chip_gen: v6e
topology: v6e:2x2x1
jax: 0.10.0
libtpu: 0.0.40
codegen_flags: <defaults>
</compile_context>

<pallas_src>
import jax
import jax.numpy as jnp
from jax.experimental import pallas as pl
from jax.experimental.pallas import tpu as pltpu


def _pairwise_sq_dist_kernel(x1_ref, x2_ref, out_ref):
    a = x1_ref[...].astype(jnp.float32)
    b = x2_ref[...].astype(jnp.float32)
    diff = a - b
    # reduce over the feature (lane) axis -> (TILE_N, 1)
    out_ref[...] = jnp.sum(diff * diff, axis=1, keepdims=True).astype(out_ref.dtype)


def _round_up(x, m):
    return ((x + m - 1) // m) * m


def _pick_tile_n(n, d, itemsize):
    # sublane packing: f32 -> 8 rows, bf16 -> 16, int8/fp8 -> 32
    sublane = max(8, 32 // itemsize)
    # VMEM for inputs = 2 arrays * 2 pipeline buffers * tile_n * d * itemsize.
    # Stay under ~12 MiB so the v5e 16 MiB scoped default still double-buffers.
    budget_bytes = 12 * 1024 * 1024
    max_rows = max(sublane, budget_bytes // (4 * d * itemsize))
    tile = min(max_rows, 1024, _round_up(n, sublane))
    tile = max(sublane, (tile // sublane) * sublane)
    return tile


def pairwise_distance(x1, x2):
    """Squared L2 distance per row: (N, D), (N, D) -> (N,)."""
    assert x1.shape == x2.shape
    assert x1.dtype == x2.dtype
    n, d = x1.shape
    itemsize = jnp.dtype(x1.dtype).itemsize
    tile_n = _pick_tile_n(n, d, itemsize)
    grid = (pl.cdiv(n, tile_n),)

    out = pl.pallas_call(
        _pairwise_sq_dist_kernel,
        out_shape=jax.ShapeDtypeStruct((n, 1), x1.dtype),
        grid_spec=pl.GridSpec(
            grid=grid,
            in_specs=[
                pl.BlockSpec((tile_n, d), lambda i: (i, 0)),
                pl.BlockSpec((tile_n, d), lambda i: (i, 0)),
            ],
            out_specs=pl.BlockSpec((tile_n, 1), lambda i: (i, 0)),
        ),
        compiler_params=pltpu.CompilerParams(
            dimension_semantics=("parallel",),
        ),
        cost_estimate=pl.CostEstimate(
            flops=3 * n * d,
            transcendentals=0,
            bytes_accessed=2 * n * d * itemsize + n * itemsize,
        ),
    )(x1, x2)
    return out[:, 0]


def pairwise_distance_ref(x1, x2):
    return jnp.sum(jnp.square(x1 - x2), axis=1)


if __name__ == "__main__":
    key = jax.random.PRNGKey(0)
    k1, k2, k3, k4 = jax.random.split(key, 4)

    # batch=8, hidden=32 (matches the (N, D) layout the module's axis=1 implies)
    N, D = 8, 32
    x1 = jax.random.normal(k1, (N, D), dtype=jnp.float32)
    x2 = jax.random.normal(k2, (N, D), dtype=jnp.float32)

    dist = pairwise_distance(x1, x2)
    jax.block_until_ready(dist)
    ref = pairwise_distance_ref(x1, x2)
    assert dist.shape == (N,), dist.shape
    assert jnp.allclose(dist, ref, rtol=1e-5, atol=1e-5), (dist, ref)

    # second small check: N not a multiple of the sublane tile (partial last block)
    N2, D2 = 20, 32
    y1 = jax.random.normal(k3, (N2, D2), dtype=jnp.float32)
    y2 = jax.random.normal(k4, (N2, D2), dtype=jnp.float32)
    dist2 = pairwise_distance(y1, y2)
    jax.block_until_ready(dist2)
    ref2 = pairwise_distance_ref(y1, y2)
    assert dist2.shape == (N2,), dist2.shape
    assert jnp.allclose(dist2, ref2, rtol=1e-5, atol=1e-5), (dist2, ref2)

    print("KERNEL_OK")
</pallas_src>

<mosaic_0001>
module attributes {stable_mosaic.version = 11 : i64} {
  func.func @_pairwise_sq_dist_kernel(%arg0: i32, %arg1: memref<8x32xf32, #tpu.memory_space<vmem>>, %arg2: memref<8x32xf32, #tpu.memory_space<vmem>>, %arg3: memref<8x1xf32, #tpu.memory_space<vmem>>) attributes {dimension_semantics = [#tpu.dimension_semantics<parallel>], iteration_bounds = array<i64: 1>, scalar_prefetch = 0 : i64, scratch_operands = 0 : i64, tpu.core_type = #tpu.core_type<tc>, window_params = [{transform_indices = @transform_0, window_bounds = array<i64: 8, 32>}, {transform_indices = @transform_1, window_bounds = array<i64: 8, 32>}, {transform_indices = @transform_2, window_bounds = array<i64: 8, 1>}]} {
    %c0 = arith.constant 0 : index
    %c0_0 = arith.constant 0 : index
    %0 = vector.load %arg1[%c0, %c0_0] : memref<8x32xf32, #tpu.memory_space<vmem>>, vector<8x32xf32>
    %c0_1 = arith.constant 0 : index
    %c0_2 = arith.constant 0 : index
    %1 = vector.load %arg2[%c0_1, %c0_2] : memref<8x32xf32, #tpu.memory_space<vmem>>, vector<8x32xf32>
    %2 = arith.subf %0, %1 : vector<8x32xf32>
    %3 = arith.mulf %2, %2 : vector<8x32xf32>
    %cst = arith.constant dense<0.000000e+00> : vector<8xf32>
    %4 = vector.multi_reduction <add>, %3, %cst [1] : vector<8x32xf32> to vector<8xf32>
    %5 = vector.shape_cast %4 : vector<8xf32> to vector<8x1xf32>
    %c0_3 = arith.constant 0 : index
    %c0_4 = arith.constant 0 : index
    %6 = vector.load %arg3[%c0_3, %c0_4] : memref<8x1xf32, #tpu.memory_space<vmem>>, vector<8x1xf32>
    tpu.vector_store %arg3[%c0_3, %c0_4], %5 {strides = array<i32>} : memref<8x1xf32, #tpu.memory_space<vmem>>, vector<8x1xf32>,
    return
  }
  func.func @transform_0(%arg0: i32) -> (i32, i32) {
    %c0_i32 = arith.constant 0 : i32
    %c0_i32_0 = arith.constant 0 : i32
    return %arg0, %c0_i32 : i32, i32
  }
  func.func @transform_1(%arg0: i32) -> (i32, i32) {
    %c0_i32 = arith.constant 0 : i32
    %c0_i32_0 = arith.constant 0 : i32
    return %arg0, %c0_i32 : i32, i32
  }
  func.func @transform_2(%arg0: i32) -> (i32, i32) {
    %c0_i32 = arith.constant 0 : i32
    %c0_i32_0 = arith.constant 0 : i32
    return %arg0, %c0_i32 : i32, i32
  }
}

</mosaic_0001>

<llo_original>
// kernel: tpu_custom_call.1
$region0: #{tpu_custom_call.1}
  #allocation0 [shape = 'u32[]', space=smem, size = 0x4, offset = 0x4, fixed_abs, tag = 'smem constant byte address 0x4 - core index']
  #allocation1 [shape = 'u32[144,128]{1,0:T(1,128)}', space=vmem, size = 0x12000, scoped, tag = 'internal scratch']
  %s0 = inlined_call_operand.hbm [shape: f32[8,32], index: 0, kind: input, shape index: {}]
  %s1 = inlined_call_operand.hbm [shape: f32[8,32], index: 1, kind: input, shape index: {}]
  %s2 = inlined_call_operand.vmem [shape: f32[8,1], index: 2, kind: output, shape index: {}]
  %s3 = sld [smem:[#allocation0]]
  $region26: #{tpu_custom_call.1} parent=0
    _
  %s5 = ssub.s32 1, %s3
  %s6 = scalar_select 0, %s5, %s3
  $region1: #{tpu_custom_call.1} parent=0
    #allocation2 [shape = 'u8[4096]{0}', space=vmem, size = 0x1000, scoped, tag = 'input window, operand 0, single buffered']
    #allocation3 [shape = 's32[1]{0}', space=sflag, size = 0x4, scoped, tag = 'scoped memory for tpu_custom_call.1']
    #allocation4 [shape = 'u8[4096]{0}', space=vmem, size = 0x1000, scoped, tag = 'input window, operand 1, single buffered']
    #allocation5 [shape = 's32[1]{0}', space=sflag, size = 0x4, scoped, tag = 'scoped memory for tpu_custom_call.1']
    %7 = vsyncpa [#allocation3], 0
    %8 = vsyncpa [#allocation5], 0
    // Predicated region
    $region2: #{tpu_custom_call.1} parent=1 // pred_check
      _
    $region3: #{tpu_custom_call.1} parent=1 // pred_check_branch
      %10 = sbr.rel (0) target = $region5
    $region4: #{tpu_custom_call.1} parent=1 // pred_region
      %s12 = ssub.s32 128, 128
      %13 = vsyncadd [#allocation3], %s12
      %s15 = sshll.u32 [#allocation2], 4
      %s16 = int_to_ptr.vmem [resolvable:$true] %s15
      %18 = dma.hbm_to_vmem [thread:$0]  %s0, 128, %s16, [#allocation3]
    $region5: #{tpu_custom_call.1} parent=1 // pred_fallthru
      _
    // Predicated region
    $region6: #{tpu_custom_call.1} parent=1 // pred_check
      _
    $region7: #{tpu_custom_call.1} parent=1 // pred_check_branch
      %20 = sbr.rel (0) target = $region9
    $region8: #{tpu_custom_call.1} parent=1 // pred_region
      %s22 = ssub.s32 128, 128
      %23 = vsyncadd [#allocation5], %s22
      %s25 = sshll.u32 [#allocation4], 4
      %s26 = int_to_ptr.vmem [resolvable:$true] %s25
      %28 = dma.hbm_to_vmem [thread:$0]  %s1, 128, %s26, [#allocation5]
    $region9: #{tpu_custom_call.1} parent=1 // pred_fallthru
      _
    // Predicated region
    $region10: #{tpu_custom_call.1} parent=1 // pred_check
      _
    $region11: #{tpu_custom_call.1} parent=1 // pred_check_branch
      %30 = sbr.rel (0) target = $region13
    $region12: #{tpu_custom_call.1} parent=1 // pred_region
      %31 = dma.done [#allocation3], 128
    $region13: #{tpu_custom_call.1} parent=1 // pred_fallthru
      _
    // Predicated region
    $region14: #{tpu_custom_call.1} parent=1 // pred_check
      _
    $region15: #{tpu_custom_call.1} parent=1 // pred_check_branch
      %33 = sbr.rel (0) target = $region17
    $region16: #{tpu_custom_call.1} parent=1 // pred_region
      %34 = dma.done [#allocation5], 128
    $region17: #{tpu_custom_call.1} parent=1 // pred_fallthru
      _
    %v35 = vld [vmem:[#allocation2] sm:$0xff]
    %v36 = vld [vmem:[#allocation4] sm:$0xff]
    %v37 = vsub.f32 %v35, %v36
    %v38 = vmul.f32 %v37, %v37
    %vm39 = vcmask 261120
    %v40 = vsel %vm39, %v38, 0.0
    %41 = vadd.xlane.f32.xlu0 %v40
    %v42 = vpop.xlane.xlu0 %41
    %vm43 = vcmask 7168
    %44 = vst.msk [vmem:[%s2] sm:$0xff] %vm43, %v42
    // Predicated region
    $region18: #{tpu_custom_call.1} parent=1 // pred_check
      _
    $region19: #{tpu_custom_call.1} parent=1 // pred_check_branch
      %46 = sbr.rel (0) target = $region21
    $region20: #{tpu_custom_call.1} parent=1 // pred_region
      _
    $region21: #{tpu_custom_call.1} parent=1 // pred_fallthru
      _
    // Predicated region
    $region22: #{tpu_custom_call.1} parent=1 // pred_check
      _
    $region23: #{tpu_custom_call.1} parent=1 // pred_check_branch
      %48 = sbr.rel (0) target = $region25
    $region24: #{tpu_custom_call.1} parent=1 // pred_region
      _
    $region25: #{tpu_custom_call.1} parent=1 // pred_fallthru
      _
    %49 = vsyncpa [#allocation3], 1
    %50 = vsyncpa [#allocation5], 1

</llo_original>
